<compile_context>
chip_gen: v7x
topology: tpu7x:2x2x1
jax: 0.10.0
libtpu: 0.0.40
codegen_flags: <defaults>
</compile_context>

<pallas_src>
import jax
import jax.numpy as jnp
from jax.experimental import pallas as pl
from jax.experimental.pallas import tpu as pltpu


def _round_up(x, m):
    return ((x + m - 1) // m) * m


def _linear_sigmoid_kernel(x_ref, wt_ref, b_ref, o_ref):
    # x_ref : (bt, dim)     VMEM  -- one batch tile (encoder dtype, e.g. f32)
    # wt_ref: (dim, c_pad)  VMEM  -- resident, same block every grid step (bf16)
    # b_ref : (1, c_pad)    VMEM  -- f32 bias
    # o_ref : (bt, c_pad)   VMEM  -- lane-dense (c_pad is a multiple of 128)
    x = x_ref[...].astype(wt_ref.dtype)            # VPU cast inside the kernel (free)
    logits = jnp.dot(x, wt_ref[...], preferred_element_type=jnp.float32)
    logits = logits + b_ref[...]                   # f32 epilogue (v5e-safe)
    o_ref[...] = jax.nn.sigmoid(logits).astype(o_ref.dtype)


def make_banking77_head(weight, bias, *, batch_tile=512,
                        compute_dtype=jnp.bfloat16, out_dtype=jnp.float32):
    """Build the classification head once.

    weight: (classNum, dim) as in torch.nn.Linear; bias: (classNum,).
    Returns a jitted callable sentemb (B, dim) -> probabilities (B, classNum).
    The weight is transposed + zero-padded to a lane-dense (dim, c_pad) slab a
    single time here (in the MXU compute dtype), so per-call work is only the
    Pallas kernel itself.
    """
    class_num, dim = weight.shape
    c_pad = _round_up(class_num, 128)

    wt_padded = jnp.zeros((dim, c_pad), compute_dtype)
    wt_padded = wt_padded.at[:, :class_num].set(weight.T.astype(compute_dtype))
    bias_padded = jnp.zeros((1, c_pad), jnp.float32)
    bias_padded = bias_padded.at[:, :class_num].set(bias.astype(jnp.float32))

    @jax.jit
    def head(sentemb):
        B, d = sentemb.shape
        assert d == dim, f"embedding dim {d} != weight dim {dim}"

        # Small B: one full-extent batch block (allowed even if B % 8 != 0, no pad).
        # Large B: batch_tile-row blocks (multiple of 8); the ragged tail block is
        # masked by Pallas on writeback, so real rows are never polluted.
        bt = batch_tile if B >= batch_tile else B
        num_tiles = pl.cdiv(B, bt)

        out = pl.pallas_call(
            _linear_sigmoid_kernel,
            out_shape=jax.ShapeDtypeStruct((B, c_pad), out_dtype),
            grid=(num_tiles,),
            in_specs=[
                pl.BlockSpec((bt, dim), lambda i: (i, 0)),     # per-tile embeddings
                pl.BlockSpec((dim, c_pad), lambda i: (0, 0)),  # resident bf16 weight
                pl.BlockSpec((1, c_pad), lambda i: (0, 0)),    # resident f32 bias
            ],
            out_specs=pl.BlockSpec((bt, c_pad), lambda i: (i, 0)),
            compiler_params=pltpu.CompilerParams(
                # Batch tiles are independent -> eligible for cross-TC sharding.
                dimension_semantics=("parallel",),
            ),
        )(sentemb, wt_padded, bias_padded)

        return out[:, :class_num]

    return head


def _reference(sentemb, weight, bias):
    return jax.nn.sigmoid(sentemb @ weight.T + bias)


if __name__ == "__main__":
    # Small shapes consistent with the module: dim = sentence-transformer
    # embedding size (384), classNum = 77 Banking77 intent classes, batch = 8.
    B, DIM, CLASS_NUM = 8, 384, 77

    key = jax.random.PRNGKey(0)
    k_emb, k_w, k_b = jax.random.split(key, 3)

    # Synthetic "sentence embeddings" standing in for sentence_model.encode(...).
    sentemb = jax.random.normal(k_emb, (B, DIM), dtype=jnp.float32)

    # Deterministic nn.Linear-style init: U(-1/sqrt(dim), 1/sqrt(dim)).
    bound = 1.0 / (DIM ** 0.5)
    weight = jax.random.uniform(k_w, (CLASS_NUM, DIM), jnp.float32, -bound, bound)
    bias = jax.random.uniform(k_b, (CLASS_NUM,), jnp.float32, -bound, bound)

    # One-time init: transpose + pad weight (bf16 slab) / bias, build jitted head.
    head = make_banking77_head(weight, bias)

    out = jax.block_until_ready(head(sentemb))
    ref = _reference(sentemb, weight, bias)
    assert out.shape == (B, CLASS_NUM)
    # bf16 weights/activations into the MXU -> compare to f32 reference at bf16 tol.
    assert jnp.allclose(out, ref, atol=2e-2, rtol=0.0), "mismatch vs reference"

    # Exercise the no-pad path with a batch that is not a multiple of 8.
    B2 = 13
    sentemb2 = jax.random.normal(jax.random.PRNGKey(1), (B2, DIM), dtype=jnp.float32)
    out2 = jax.block_until_ready(head(sentemb2))
    ref2 = _reference(sentemb2, weight, bias)
    assert out2.shape == (B2, CLASS_NUM)
    assert jnp.allclose(out2, ref2, atol=2e-2, rtol=0.0), "mismatch (ragged batch)"

    print("KERNEL_OK")
</pallas_src>

<mosaic_0001>
module attributes {stable_mosaic.version = 11 : i64} {
  func.func @_linear_sigmoid_kernel(%arg0: i32, %arg1: memref<8x384xf32, #tpu.memory_space<vmem>>, %arg2: memref<384x128xbf16, #tpu.memory_space<vmem>>, %arg3: memref<1x128xf32, #tpu.memory_space<vmem>>, %arg4: memref<8x128xf32, #tpu.memory_space<vmem>>) attributes {dimension_semantics = [#tpu.dimension_semantics<parallel>], iteration_bounds = array<i64: 1>, scalar_prefetch = 0 : i64, scratch_operands = 0 : i64, tpu.core_type = #tpu.core_type<tc>, window_params = [{transform_indices = @transform_0, window_bounds = array<i64: 8, 384>}, {pipeline_mode = #tpu.pipeline_mode<synchronous>, transform_indices = @transform_1, window_bounds = array<i64: 384, 128>}, {pipeline_mode = #tpu.pipeline_mode<synchronous>, transform_indices = @transform_2, window_bounds = array<i64: 1, 128>}, {transform_indices = @transform_3, window_bounds = array<i64: 8, 128>}]} {
    %c0 = arith.constant 0 : index
    %c0_0 = arith.constant 0 : index
    %0 = vector.load %arg1[%c0, %c0_0] : memref<8x384xf32, #tpu.memory_space<vmem>>, vector<8x384xf32>
    %1 = arith.truncf %0 : vector<8x384xf32> to vector<8x384xbf16>
    %c0_1 = arith.constant 0 : index
    %c0_2 = arith.constant 0 : index
    %2 = vector.load %arg2[%c0_1, %c0_2] : memref<384x128xbf16, #tpu.memory_space<vmem>>, vector<384x128xbf16>
    %cst = arith.constant dense<0.000000e+00> : vector<8x128xf32>
    %3 = tpu.matmul %1, %2, %cst {dimension_numbers = #tpu.dot_dimension_numbers<[1], [0], [0], [1], [0, 0, 1, 1], [], []>} : vector<8x384xbf16>, vector<384x128xbf16>, vector<8x128xf32> -> vector<8x128xf32>
    %c0_3 = arith.constant 0 : index
    %c0_4 = arith.constant 0 : index
    %4 = vector.load %arg3[%c0_3, %c0_4] : memref<1x128xf32, #tpu.memory_space<vmem>>, vector<1x128xf32>
    %5 = vector.broadcast %4 : vector<1x128xf32> to vector<8x128xf32>
    %6 = arith.addf %3, %5 : vector<8x128xf32>
    %7 = arith.negf %6 : vector<8x128xf32>
    %8 = math.exp %7 : vector<8x128xf32>
    %cst_5 = arith.constant 1.000000e+00 : f32
    %9 = vector.broadcast %cst_5 : f32 to vector<8x128xf32>
    %10 = arith.addf %9, %8 : vector<8x128xf32>
    %11 = arith.divf %9, %10 : vector<8x128xf32>
    %c0_6 = arith.constant 0 : index
    %c0_7 = arith.constant 0 : index
    %12 = vector.load %arg4[%c0_6, %c0_7] : memref<8x128xf32, #tpu.memory_space<vmem>>, vector<8x128xf32>
    tpu.vector_store %arg4[%c0_6, %c0_7], %11 {strides = array<i32>} : memref<8x128xf32, #tpu.memory_space<vmem>>, vector<8x128xf32>,
    return
  }
  func.func @transform_0(%arg0: i32) -> (i32, i32) {
    %c0_i32 = arith.constant 0 : i32
    %c0_i32_0 = arith.constant 0 : i32
    return %arg0, %c0_i32 : i32, i32
  }
  func.func @transform_1(%arg0: i32) -> (i32, i32) {
    %c0_i32 = arith.constant 0 : i32
    %c0_i32_0 = arith.constant 0 : i32
    %c0_i32_1 = arith.constant 0 : i32
    return %c0_i32, %c0_i32_0 : i32, i32
  }
  func.func @transform_2(%arg0: i32) -> (i32, i32) {
    %c0_i32 = arith.constant 0 : i32
    %c0_i32_0 = arith.constant 0 : i32
    %c0_i32_1 = arith.constant 0 : i32
    return %c0_i32, %c0_i32_0 : i32, i32
  }
  func.func @transform_3(%arg0: i32) -> (i32, i32) {
    %c0_i32 = arith.constant 0 : i32
    %c0_i32_0 = arith.constant 0 : i32
    return %arg0, %c0_i32 : i32, i32
  }
}

</mosaic_0001>

<llo_original>
// kernel: head.1
$region0: #{head.1}
  #allocation0 [shape = 'u32[]', space=smem, size = 0x4, offset = 0x4, fixed_abs, tag = 'smem constant byte address 0x4 - core index']
  #allocation1 [shape = 'u32[144,128]{1,0:T(1,128)}', space=vmem, size = 0x12000, scoped, tag = 'internal scratch']
  %s0 = inlined_call_operand.hbm [shape: f32[8,384], index: 0, kind: input, shape index: {}]
  %s1 = inlined_call_operand.hbm [shape: bf16[384,128], index: 1, kind: input, shape index: {}]
  %s2 = inlined_call_operand.vmem [shape: f32[1,128], index: 2, kind: input, shape index: {}]
  %s3 = inlined_call_operand.hbm [shape: f32[8,128], index: 3, kind: output, shape index: {}]
  %s4 = sld [smem:[#allocation0]]
  $region30: #{head.1} parent=0
    _
  %s6 = ssub.s32 1, %s4
  %s7 = scalar_select 0, %s6, %s4
  $region1: #{head.1} parent=0
    #allocation2 [shape = 'u8[12288]{0}', space=vmem, size = 0x3000, scoped, tag = 'input window, operand 0, single buffered']
    #allocation3 [shape = 's32[1]{0}', space=sflag, size = 0x4, scoped, tag = 'scoped memory for head.1']
    #allocation4 [shape = 's32[1]{0}', space=sflag, size = 0x4, scoped, tag = 'scoped memory for head.1']
    #allocation5 [shape = 'u8[98304]{0}', space=vmem, size = 0x18000, scoped, tag = 'input window, operand 1, single buffered']
    #allocation6 [shape = 's32[1]{0}', space=sflag, size = 0x4, scoped, tag = 'scoped memory for head.1']
    #allocation7 [shape = 'u8[4096]{0}', space=vmem, size = 0x1000, scoped, tag = 'output window, operand 0, single buffered']
    %8 = vsyncpa [#allocation3], 0
    %9 = vsyncpa [#allocation6], 0
    %10 = vsyncpa [#allocation4], 0
    // Predicated region
    $region2: #{head.1} parent=1 // pred_check
      _
    $region3: #{head.1} parent=1 // pred_check_branch
      %12 = sbr.rel (0) target = $region5
    $region4: #{head.1} parent=1 // pred_region
      %s14 = ssub.s32 384, 384
      %15 = vsyncadd [#allocation3], %s14
      %s17 = sshll.u32 [#allocation2], 4
      %s18 = int_to_ptr.vmem [resolvable:$true] %s17
      %20 = dma.hbm_to_vmem [thread:$0]  %s0, 384, %s18, [#allocation3]
    $region5: #{head.1} parent=1 // pred_fallthru
      _
    // Predicated region
    $region6: #{head.1} parent=1 // pred_check
      _
    $region7: #{head.1} parent=1 // pred_check_branch
      %22 = sbr.rel (0) target = $region9
    $region8: #{head.1} parent=1 // pred_region
      %s24 = ssub.s32 3072, 3072
      %25 = vsyncadd [#allocation6], %s24
      %s26 = sshll.u32 [#allocation5], 4
      %s27 = int_to_ptr.vmem [resolvable:$true] %s26
      %32 = dma.hbm_to_vmem [thread:$0]  %s1, 3072, %s27, [#allocation6], 64, 64, 4
    $region9: #{head.1} parent=1 // pred_fallthru
      _
    // Predicated region
    $region10: #{head.1} parent=1 // pred_check
      _
    $region11: #{head.1} parent=1 // pred_check_branch
      %34 = sbr.rel (0) target = $region13
    $region12: #{head.1} parent=1 // pred_region
      _
    $region13: #{head.1} parent=1 // pred_fallthru
      _
    // Predicated region
    $region14: #{head.1} parent=1 // pred_check
      _
    $region15: #{head.1} parent=1 // pred_check_branch
      %36 = sbr.rel (0) target = $region17
    $region16: #{head.1} parent=1 // pred_region
      %37 = dma.done [#allocation3], 384
    $region17: #{head.1} parent=1 // pred_fallthru
      _
    // Predicated region
    $region18: #{head.1} parent=1 // pred_check
      _
    $region19: #{head.1} parent=1 // pred_check_branch
      %39 = sbr.rel (0) target = $region21
    $region20: #{head.1} parent=1 // pred_region
      %40 = dma.done [#allocation6], 3072
    $region21: #{head.1} parent=1 // pred_fallthru
      _
    %v42 = vld [vmem:[#allocation2] sm:$0xff]
    %v43 = vld [vmem:[#allocation2 + $0x8] sm:$0xff]
    %v44 = vld [vmem:[#allocation2 + $0x10] sm:$0xff]
    %v45 = vpack.c.bf16 %v42, %v42
    %v46 = vpack.c.bf16 %v43, %v43
    %v47 = vpack.c.bf16 %v44, %v44
    %v48 = vld [vmem:[#allocation5] sm:$0xf]
    %v49 = vld [vmem:[#allocation5 + $0x4] sm:$0xf]
    %v50 = vld [vmem:[#allocation5 + $0x8] sm:$0xf]
    %v51 = vld [vmem:[#allocation5 + $0xc] sm:$0xf]
    %v52 = vld [vmem:[#allocation5 + $0x10] sm:$0xf]
    %v53 = vld [vmem:[#allocation5 + $0x14] sm:$0xf]
    %v54 = vld [vmem:[#allocation5 + $0x18] sm:$0xf]
    %v55 = vld [vmem:[#allocation5 + $0x1c] sm:$0xf]
    %v56 = vld [vmem:[#allocation5 + $0x20] sm:$0xf]
    %v57 = vld [vmem:[#allocation5 + $0x24] sm:$0xf]
    %v58 = vld [vmem:[#allocation5 + $0x28] sm:$0xf]
    %v59 = vld [vmem:[#allocation5 + $0x2c] sm:$0xf]
    %v60 = vld [vmem:[#allocation5 + $0x30] sm:$0xf]
    %v61 = vld [vmem:[#allocation5 + $0x34] sm:$0xf]
    %v62 = vld [vmem:[#allocation5 + $0x38] sm:$0xf]
    %v63 = vld [vmem:[#allocation5 + $0x3c] sm:$0xf]
    %v64 = vld [vmem:[#allocation5 + $0x40] sm:$0xf]
    %v65 = vld [vmem:[#allocation5 + $0x44] sm:$0xf]
    %v66 = vld [vmem:[#allocation5 + $0x48] sm:$0xf]
    %v67 = vld [vmem:[#allocation5 + $0x4c] sm:$0xf]
    %v68 = vld [vmem:[#allocation5 + $0x50] sm:$0xf]
    %v69 = vld [vmem:[#allocation5 + $0x54] sm:$0xf]
    %v70 = vld [vmem:[#allocation5 + $0x58] sm:$0xf]
    %v71 = vld [vmem:[#allocation5 + $0x5c] sm:$0xf]
    %v72 = vld [vmem:[#allocation5 + $0x60] sm:$0xf]
    %v73 = vld [vmem:[#allocation5 + $0x64] sm:$0xf]
    %v74 = vld [vmem:[#allocation5 + $0x68] sm:$0xf]
    %v75 = vld [vmem:[#allocation5 + $0x6c] sm:$0xf]
    %v76 = vld [vmem:[#allocation5 + $0x70] sm:$0xf]
    %v77 = vld [vmem:[#allocation5 + $0x74] sm:$0xf]
    %v78 = vld [vmem:[#allocation5 + $0x78] sm:$0xf]
    %v79 = vld [vmem:[#allocation5 + $0x7c] sm:$0xf]
    %v80 = vld [vmem:[#allocation5 + $0x80] sm:$0xf]
    %v81 = vld [vmem:[#allocation5 + $0x84] sm:$0xf]
    %v82 = vld [vmem:[#allocation5 + $0x88] sm:$0xf]
    %v83 = vld [vmem:[#allocation5 + $0x8c] sm:$0xf]
    %v84 = vld [vmem:[#allocation5 + $0x90] sm:$0xf]
    %v85 = vld [vmem:[#allocation5 + $0x94] sm:$0xf]
    %v86 = vld [vmem:[#allocation5 + $0x98] sm:$0xf]
    %v87 = vld [vmem:[#allocation5 + $0x9c] sm:$0xf]
    %v88 = vld [vmem:[#allocation5 + $0xa0] sm:$0xf]
    %v89 = vld [vmem:[#allocation5 + $0xa4] sm:$0xf]
    %v90 = vld [vmem:[#allocation5 + $0xa8] sm:$0xf]
    %v91 = vld [vmem:[#allocation5 + $0xac] sm:$0xf]
    %v92 = vld [vmem:[#allocation5 + $0xb0] sm:$0xf]
    %v93 = vld [vmem:[#allocation5 + $0xb4] sm:$0xf]
    %v94 = vld [vmem:[#allocation5 + $0xb8] sm:$0xf]
    %v95 = vld [vmem:[#allocation5 + $0xbc] sm:$0xf]
    %v96 = vld [vmem:[%s2] sm:$0x1]
    %v98 = vlaneseq
    %v99 = vshrl.u32 %v98, 7
    %v100 = vsub.s32 0, %v99
    %v101 = vrot.slane %v96, %v100
    %v151 = vunpack.c.l.b16 %v48
    %v152 = vunpack.c.l.b16 %v49
    %v153 = vunpack.c.l.b16 %v50
    %v154 = vunpack.c.l.b16 %v51
    %v155 = vunpack.c.l.b16 %v52
    %v156 = vunpack.c.l.b16 %v53
    %v157 = vunpack.c.l.b16 %v54
    %v158 = vunpack.c.l.b16 %v55
    %v159 = vunpack.c.l.b16 %v56
    %v160 = vunpack.c.l.b16 %v57
    %v161 = vunpack.c.l.b16 %v58
    %v162 = vunpack.c.l.b16 %v59
    %v163 = vunpack.c.l.b16 %v60
    %v164 = vunpack.c.l.b16 %v61
    %v165 = vunpack.c.l.b16 %v62
    %v166 = vunpack.c.l.b16 %v63
    %v167 = vunpack.c.l.b16 %v64
    %v168 = vunpack.c.l.b16 %v65
    %v169 = vunpack.c.l.b16 %v66
    %v170 = vunpack.c.l.b16 %v67
    %v171 = vunpack.c.l.b16 %v68
    %v172 = vunpack.c.l.b16 %v69
    %v173 = vunpack.c.l.b16 %v70
    %v174 = vunpack.c.l.b16 %v71
    %v175 = vunpack.c.l.b16 %v72
    %v176 = vunpack.c.l.b16 %v73
    %v177 = vunpack.c.l.b16 %v74
    %v178 = vunpack.c.l.b16 %v75
    %v179 = vunpack.c.l.b16 %v76
    %v180 = vunpack.c.l.b16 %v77
    %v181 = vunpack.c.l.b16 %v78
    %v182 = vunpack.c.l.b16 %v79
    %v183 = vunpack.c.l.b16 %v80
    %v184 = vunpack.c.l.b16 %v81
    %v185 = vunpack.c.l.b16 %v82
    %v186 = vunpack.c.l.b16 %v83
    %v187 = vunpack.c.l.b16 %v84
    %v188 = vunpack.c.l.b16 %v85
    %v189 = vunpack.c.l.b16 %v86
    %v190 = vunpack.c.l.b16 %v87
    %v191 = vunpack.c.l.b16 %v88
    %v192 = vunpack.c.l.b16 %v89
    %v193 = vunpack.c.l.b16 %v90
    %v194 = vunpack.c.l.b16 %v91
    %v195 = vunpack.c.l.b16 %v92
    %v196 = vunpack.c.l.b16 %v93
    %v197 = vunpack.c.l.b16 %v94
    %v198 = vunpack.c.l.b16 %v95
    %v199 = vpack.c.b16 %v152, %v151
    %v200 = vpack.c.b16 %v154, %v153
    %v201 = vpack.c.b16 %v156, %v155
    %v202 = vpack.c.b16 %v158, %v157
    %v203 = vpack.c.b16 %v160, %v159
    %v204 = vpack.c.b16 %v162, %v161
    %v205 = vpack.c.b16 %v164, %v163
    %v206 = vpack.c.b16 %v166, %v165
    %v207 = vpack.c.b16 %v168, %v167
    %v208 = vpack.c.b16 %v170, %v169
    %v209 = vpack.c.b16 %v172, %v171
    %v210 = vpack.c.b16 %v174, %v173
    %v211 = vpack.c.b16 %v176, %v175
    %v212 = vpack.c.b16 %v178, %v177
    %v213 = vpack.c.b16 %v180, %v179
    %v214 = vpack.c.b16 %v182, %v181
    %v215 = vpack.c.b16 %v184, %v183
    %v216 = vpack.c.b16 %v186, %v185
    %v217 = vpack.c.b16 %v188, %v187
    %v218 = vpack.c.b16 %v190, %v189
    %v219 = vpack.c.b16 %v192, %v191
    %v220 = vpack.c.b16 %v194, %v193
    %v221 = vpack.c.b16 %v196, %v195
    %v222 = vpack.c.b16 %v198, %v197
    %247 = vmatprep.subr.bf16.mxu0 0
    %248 = vmatpush1.bf16.msra.mxu0 %v199
    %249 = vmatprep.subr.bf16.mxu0 0
    %250 = vmatpush1.bf16.msra.mxu0 %v200
    %251 = vmatprep.subr.bf16.mxu0 0
    %252 = vmatpush1.bf16.msra.mxu0 %v201
    %253 = vmatprep.subr.bf16.mxu0 0
    %254 = vmatpush1.bf16.msra.mxu0 %v202
    %255 = vmatprep.subr.bf16.mxu0 0
    %256 = vmatpush1.bf16.msra.mxu0 %v203
    %257 = vmatprep.subr.bf16.mxu0 0
    %258 = vmatpush1.bf16.msra.mxu0 %v204
    %259 = vmatprep.subr.bf16.mxu0 0
    %260 = vmatpush1.bf16.msra.mxu0 %v205
    %261 = vmatprep.subr.bf16.mxu0 0
    %262 = vmatpush1.bf16.msra.mxu0 %v206
    %263 = vmatprep.subr.bf16.mxu0 0
    %264 = vmatpush1.bf16.msra.mxu0 %v207
    %265 = vmatprep.subr.bf16.mxu0 0
    %266 = vmatpush1.bf16.msra.mxu0 %v208
    %267 = vmatprep.subr.bf16.mxu0 0
    %268 = vmatpush1.bf16.msra.mxu0 %v209
    %269 = vmatprep.subr.bf16.mxu0 0
    %270 = vmatpush1.bf16.msra.mxu0 %v210
    %271 = vmatprep.subr.bf16.mxu0 0
    %272 = vmatpush1.bf16.msra.mxu0 %v211
    %273 = vmatprep.subr.bf16.mxu0 0
    %274 = vmatpush1.bf16.msra.mxu0 %v212
    %275 = vmatprep.subr.bf16.mxu0 0
    %276 = vmatpush1.bf16.msra.mxu0 %v213
    %277 = vmatprep.subr.bf16.mxu0 0
    %278 = vmatpush1.bf16.msra.mxu0 %v214
    %279 = vmatprep.mubr.bf16.mxu0 %v46
    %280 = vmatmul.mubr.bf16.gmra.mrb[0].mxu0 %v45
    %v281 = vpop.f32.mrb[0].mxu0
    %v282 = vadd.f32 %v101, %v281
    %v283 = vpop.f32.mrb[0].mxu0
    %v284 = vpop.f32.mrb[0].mxu0
    %v285 = vpop.f32.mrb[0].mxu0
    %286 = vdwg.mxu0
    %287 = vmatprep.subr.bf16.mxu0 0
    %288 = vmatpush1.bf16.msra.mxu0 %v215
    %289 = vmatprep.subr.bf16.mxu0 0
    %290 = vmatpush1.bf16.msra.mxu0 %v216
    %291 = vmatprep.subr.bf16.mxu0 0
    %292 = vmatpush1.bf16.msra.mxu0 %v217
    %293 = vmatprep.subr.bf16.mxu0 0
    %294 = vmatpush1.bf16.msra.mxu0 %v218
    %295 = vmatprep.subr.bf16.mxu0 0
    %296 = vmatpush1.bf16.msra.mxu0 %v219
    %297 = vmatprep.subr.bf16.mxu0 0
    %298 = vmatpush1.bf16.msra.mxu0 %v220
    %299 = vmatprep.subr.bf16.mxu0 0
    %300 = vmatpush1.bf16.msra.mxu0 %v221
    %301 = vmatprep.subr.bf16.mxu0 0
    %302 = vmatpush1.bf16.msra.mxu0 %v222
    %303 = vmatprep.subr.bf16.mxu0 0
    %304 = vmatpush1.bf16.msra.mxu0 0
    %305 = vmatprep.subr.bf16.mxu0 0
    %306 = vmatpush1.bf16.msra.mxu0 0
    %307 = vmatprep.subr.bf16.mxu0 0
    %308 = vmatpush1.bf16.msra.mxu0 0
    %309 = vmatprep.subr.bf16.mxu0 0
    %310 = vmatpush1.bf16.msra.mxu0 0
    %311 = vmatprep.subr.bf16.mxu0 0
    %312 = vmatpush1.bf16.msra.mxu0 0
    %313 = vmatprep.subr.bf16.mxu0 0
    %314 = vmatpush1.bf16.msra.mxu0 0
    %315 = vmatprep.subr.bf16.mxu0 0
    %316 = vmatpush1.bf16.msra.mxu0 0
    %317 = vmatprep.subr.bf16.mxu0 0
    %318 = vmatpush1.bf16.msra.mxu0 0
    %319 = vmatprep.mubr.bf16.mxu0 0
    %320 = vmatmul.mubr.bf16.gmra.mrb[0].mxu0 %v47
    %v321 = vpop.f32.mrb[0].mxu0
    %v322 = vadd.f32 %v282, %v321
    %v323 = vpop.f32.mrb[0].mxu0
    %v324 = vpop.f32.mrb[0].mxu0
    %v325 = vpop.f32.mrb[0].mxu0
    %326 = vdwg.mxu0
    %v327 = vxor.u32 %v322, 2147483648
    %v328 = vmul.f32 %v327, 1.442695
    %v329 = vpow.pop %v328
    %v330 = vadd.f32 %v329, 1.0
    %v331 = vrcp.pop %v330
    %v332 = vmul.f32 1.0, %v331
    %333 = vst [vmem:[#allocation7] sm:$0xff] %v332
    // Predicated region
    $region22: #{head.1} parent=1 // pred_check
      _
    $region23: #{head.1} parent=1 // pred_check_branch
      %335 = sbr.rel (0) target = $region25
    $region24: #{head.1} parent=1 // pred_region
      %s337 = ssub.s32 128, 128
      %338 = vsyncadd [#allocation4], %s337
      %s340 = sshll.u32 [#allocation7], 4
      %s341 = int_to_ptr.vmem [resolvable:$true] %s340
      %343 = dma.vmem_to_hbm [thread:$0]  %s341, 128, %s3, [#allocation4]
    $region25: #{head.1} parent=1 // pred_fallthru
      _
    // Predicated region
    $region26: #{head.1} parent=1 // pred_check
      _
    $region27: #{head.1} parent=1 // pred_check_branch
      %345 = sbr.rel (0) target = $region29
    $region28: #{head.1} parent=1 // pred_region
      %346 = dma.done [#allocation4], 128
    $region29: #{head.1} parent=1 // pred_fallthru
      _
    %347 = vsyncpa [#allocation3], 1
    %348 = vsyncpa [#allocation6], 1
    %349 = vsyncpa [#allocation4], 1

</llo_original>
